<compile_context>
chip_gen: v7x
topology: tpu7x:2x2x1
jax: 0.10.0
libtpu: 0.0.40
codegen_flags: <defaults>
</compile_context>

<pallas_src>
import jax
import jax.numpy as jnp
import numpy as np
from jax.experimental import pallas as pl
from jax.experimental.pallas import tpu as pltpu


# ----------------------------------------------------------------------------- config
B = 2              # batch
NUM_FRAMES = 4
NUM_HIST = 3
NUM_PRED = 1
IMG = 16
C_IN = 3
PS = 8             # patch size
PH = IMG // PS
PW = IMG // PS
P = PH * PW                      # num patches = 4
PATCH_DIM = C_IN * PS * PS       # 192
ENC_EMB = 32                     # encoder.emb_dim
PROPRIO_IN = 5
ACTION_IN = 6
PROPRIO_EMB = 4                  # proprio_dim (encoder output)
ACTION_EMB = 4                   # action_dim  (encoder output)
NUM_PROPRIO_REPEAT = 2
NUM_ACTION_REPEAT = 2
CONCAT_DIM = 1
PROPRIO_DIM = PROPRIO_EMB * NUM_PROPRIO_REPEAT   # 8
ACTION_DIM = ACTION_EMB * NUM_ACTION_REPEAT      # 8
EMB_DIM = ENC_EMB + PROPRIO_DIM + ACTION_DIM     # 48
PA_IN = PROPRIO_IN + ACTION_IN                   # 11
DECODER_LATENT_LOSS_WEIGHT = 0.25

# Token counts / offsets (tokens ordered (t, b, p); all are multiples of 8)
TOK_ALL = NUM_FRAMES * B * P     # 32
TOK_SRC = NUM_HIST * B * P       # 24
TGT_OFF = NUM_PRED * B * P       # 8

# Packed-activation / packed-weight layout
X_DIM = 256                      # [patches 0:192 | proprio+action 192:203 | const-1 @203 | 0-pad]
CONST_COL = PATCH_DIM + PA_IN    # 203
Z_W_OFF = 0                      # rows   0:256  -> z (visual + proprio/action, bias folded)
PRED_W_OFF = 256                 # rows 256:384  -> predictor (bias folded)
DEC_LO_OFF = 384                 # rows 384:512  -> decoder output lanes   0:128
DEC_HI_OFF = 512                 # rows 512:640  -> decoder output lanes 128:256 (only 0:64 used)
W_ROWS = 640


# ----------------------------------------------------------------------------- fused Pallas kernel
def _fused_forward_kernel(x_ref, w_ref, z_pred_ref, dec_ref, loss_ref):
    f32 = jnp.float32
    x = x_ref[...]                                                       # (32, 256)

    # ---- encode: ONE matmul produces the full 48-lane embedding for every token
    #      (visual patch-embed, proprio x2, action x2, bias via the constant-1 lane).
    z = jnp.dot(x, w_ref[Z_W_OFF:Z_W_OFF + X_DIM, :],
                preferred_element_type=f32)                              # (32, 128), lane 127 == 1

    # ---- predictor on the history tokens (t < NUM_HIST -> rows [0:TOK_SRC]) -------
    z_pred = jnp.dot(z[0:TOK_SRC, :], w_ref[PRED_W_OFF:PRED_W_OFF + 128, :],
                     preferred_element_type=f32)                         # (24, 128)
    z_pred_ref[...] = z_pred                                             # lane-dense 128-wide store

    # ---- decoder: pred + recon branches, lo/hi 128-lane output halves, stored straight
    #      into the four aligned quadrants of the single (56, 256) output ref.
    w_dec_lo = w_ref[DEC_LO_OFF:DEC_LO_OFF + 128, :]
    w_dec_hi = w_ref[DEC_HI_OFF:DEC_HI_OFF + 128, :]
    dec_pred_lo = jnp.dot(z_pred, w_dec_lo, preferred_element_type=f32)  # (24, 128)
    dec_pred_hi = jnp.dot(z_pred, w_dec_hi, preferred_element_type=f32)  # (24, 128)
    dec_rec_lo = jnp.dot(z, w_dec_lo, preferred_element_type=f32)        # (32, 128)
    dec_rec_hi = jnp.dot(z, w_dec_hi, preferred_element_type=f32)        # (32, 128)
    dec_ref[0:TOK_SRC, 0:128] = dec_pred_lo
    dec_ref[0:TOK_SRC, 128:256] = dec_pred_hi
    dec_ref[TOK_SRC:TOK_SRC + TOK_ALL, 0:128] = dec_rec_lo
    dec_ref[TOK_SRC:TOK_SRC + TOK_ALL, 128:256] = dec_rec_hi

    # ---- losses (patch-space MSEs: unpatchify is a pure permutation, so identical) ----
    x_lo = x[:, 0:128]                                                   # patch lanes 0:128
    x_hi = x[:, 128:256]                                                 # patch lanes 128:192 + pa/const
    lane_hi = jax.lax.broadcasted_iota(jnp.int32, x_hi.shape, 1)
    x_hi_m = jnp.where(lane_hi < (PATCH_DIM - 128), x_hi, 0.0)           # zero pa/const lanes;
                                                                         # decoder hi lanes >=64 are 0 too
    d_rec = (dec_rec_lo - x_lo) ** 2 + (dec_rec_hi - x_hi_m) ** 2        # (32, 128)
    d_pred = ((dec_pred_lo - x_lo[TGT_OFF:TOK_ALL, :]) ** 2
              + (dec_pred_hi - x_hi_m[TGT_OFF:TOK_ALL, :]) ** 2)         # (24, 128)

    dz2 = (z_pred - z[TGT_OFF:TOK_ALL, :]) ** 2                          # (24, 128)
    dz_row = jnp.sum(dz2, axis=0, keepdims=True)                         # sublane-reduce first
    lane = jax.lax.broadcasted_iota(jnp.int32, dz_row.shape, 1)
    sum_vis = jnp.sum(jnp.where(lane < ENC_EMB, dz_row, 0.0))
    sum_prop = jnp.sum(jnp.where((lane >= ENC_EMB) & (lane < ENC_EMB + PROPRIO_DIM), dz_row, 0.0))

    loss_ref[0] = jnp.sum(d_pred) / f32(TOK_SRC * PATCH_DIM)                     # recon_loss_pred
    loss_ref[1] = (sum_vis + sum_prop) / f32(TOK_SRC * (EMB_DIM - ACTION_DIM))   # z_loss
    loss_ref[2] = sum_vis / f32(TOK_SRC * ENC_EMB)                               # z_visual_loss
    loss_ref[3] = sum_prop / f32(TOK_SRC * PROPRIO_DIM)                          # z_proprio_loss
    loss_ref[4] = jnp.sum(d_rec) / f32(TOK_ALL * PATCH_DIM)                      # recon_loss_reconstructed


def _fused_forward(x, w_slab):
    vmem = pl.BlockSpec(memory_space=pltpu.MemorySpace.VMEM)
    smem = pl.BlockSpec(memory_space=pltpu.MemorySpace.SMEM)
    flops = 2 * (TOK_ALL * X_DIM * 128 + TOK_SRC * 128 * 128
                 + 2 * (TOK_SRC + TOK_ALL) * 128 * 128)
    bytes_accessed = 4 * (TOK_ALL * X_DIM + W_ROWS * 128
                          + TOK_SRC * 128 + (TOK_SRC + TOK_ALL) * 256 + 5)
    return pl.pallas_call(
        _fused_forward_kernel,
        out_shape=(
            jax.ShapeDtypeStruct((TOK_SRC, 128), jnp.float32),            # z_pred (lanes 0:48 valid)
            jax.ShapeDtypeStruct((TOK_SRC + TOK_ALL, 256), jnp.float32),  # decoded patches (pred|recon)
            jax.ShapeDtypeStruct((5,), jnp.float32),                      # loss scalars
        ),
        in_specs=[vmem, vmem],
        out_specs=(vmem, vmem, smem),
        cost_estimate=pl.CostEstimate(flops=flops, transcendentals=0,
                                      bytes_accessed=bytes_accessed),
    )(x, w_slab)


# ----------------------------------------------------------------------------- parameters
def init_params(key):
    ks = jax.random.split(key, 10)
    s = 0.02
    return {
        "enc_w": jax.random.normal(ks[0], (PATCH_DIM, ENC_EMB), jnp.float32) * s,
        "enc_b": jax.random.normal(ks[1], (ENC_EMB,), jnp.float32) * s,
        "prop_w": jax.random.normal(ks[2], (PROPRIO_IN, PROPRIO_EMB), jnp.float32) * s,
        "prop_b": jax.random.normal(ks[3], (PROPRIO_EMB,), jnp.float32) * s,
        "act_w": jax.random.normal(ks[4], (ACTION_IN, ACTION_EMB), jnp.float32) * s,
        "act_b": jax.random.normal(ks[5], (ACTION_EMB,), jnp.float32) * s,
        "pred_w": jax.random.normal(ks[6], (EMB_DIM, EMB_DIM), jnp.float32) * s,
        "pred_b": jax.random.normal(ks[7], (EMB_DIM,), jnp.float32) * s,
        "dec_w": jax.random.normal(ks[8], (ENC_EMB, PATCH_DIM), jnp.float32) * s,
        "dec_b": jax.random.normal(ks[9], (PATCH_DIM,), jnp.float32) * s,
    }


def pack_params(params):
    """Build the single (640, 128) weight slab ONCE (hoisted out of the per-step forward).

    Biases are folded in via the constant-1 activation lane (x[:, 203] == 1, z[:, 127] == 1,
    z_pred[:, 127] == 1), so every sub-module becomes a pure matmul inside the kernel.
    """
    f32 = jnp.float32
    W = jnp.zeros((W_ROWS, 128), f32)

    # rows 0:256  — z = [visual emb | proprio x2 | action x2 | 0 ... | 1 @ lane 127]
    W = W.at[0:PATCH_DIM, 0:ENC_EMB].set(params["enc_w"])
    for r in range(NUM_PROPRIO_REPEAT):
        c = ENC_EMB + r * PROPRIO_EMB
        W = W.at[PATCH_DIM:PATCH_DIM + PROPRIO_IN, c:c + PROPRIO_EMB].set(params["prop_w"])
    for r in range(NUM_ACTION_REPEAT):
        c = ENC_EMB + PROPRIO_DIM + r * ACTION_EMB
        W = W.at[PATCH_DIM + PROPRIO_IN:PATCH_DIM + PROPRIO_IN + ACTION_IN,
                 c:c + ACTION_EMB].set(params["act_w"])
    z_bias = jnp.concatenate([params["enc_b"],
                              jnp.tile(params["prop_b"], NUM_PROPRIO_REPEAT),
                              jnp.tile(params["act_b"], NUM_ACTION_REPEAT)])
    W = W.at[CONST_COL, 0:EMB_DIM].set(z_bias)
    W = W.at[CONST_COL, 127].set(1.0)

    # rows 256:384 — predictor
    W = W.at[PRED_W_OFF:PRED_W_OFF + EMB_DIM, 0:EMB_DIM].set(params["pred_w"])
    W = W.at[PRED_W_OFF + 127, 0:EMB_DIM].set(params["pred_b"])
    W = W.at[PRED_W_OFF + 127, 127].set(1.0)

    # rows 384:512 — decoder, output lanes 0:128
    W = W.at[DEC_LO_OFF:DEC_LO_OFF + ENC_EMB, 0:128].set(params["dec_w"][:, 0:128])
    W = W.at[DEC_LO_OFF + 127, 0:128].set(params["dec_b"][0:128])

    # rows 512:640 — decoder, output lanes 128:192 (packed into lanes 0:64)
    W = W.at[DEC_HI_OFF:DEC_HI_OFF + ENC_EMB, 0:PATCH_DIM - 128].set(params["dec_w"][:, 128:PATCH_DIM])
    W = W.at[DEC_HI_OFF + 127, 0:PATCH_DIM - 128].set(params["dec_b"][128:PATCH_DIM])
    return W


# ----------------------------------------------------------------------------- layout glue (pure permutations)
def _patchify(visual_n):
    # (N, C, H, W) -> (N, P, C*PS*PS), patches row-major over (PH, PW)
    n = visual_n.shape[0]
    x = visual_n.reshape(n, C_IN, PH, PS, PW, PS)
    x = x.transpose(0, 2, 4, 1, 3, 5)
    return x.reshape(n, P, PATCH_DIM)


def _unpatchify(patches_n):
    # (N, P, C*PS*PS) -> (N, C, H, W)
    n = patches_n.shape[0]
    x = patches_n.reshape(n, PH, PW, C_IN, PS, PS)
    x = x.transpose(0, 3, 1, 4, 2, 5)
    return x.reshape(n, C_IN, IMG, IMG)


# ----------------------------------------------------------------------------- full forward
def forward(w_slab, obs, act):
    f32 = jnp.float32
    visual = obs["visual"].astype(f32)          # (B, T, C, H, W)
    proprio = obs["proprio"].astype(f32)        # (B, T, 5)
    action = act.astype(f32)                    # (B, T, 6)

    # ---- token layout (t, b, p): history / target frame windows become contiguous,
    #      8-aligned sublane slices inside the kernel. encoder_transform = identity (non-dino).
    vis_tb = jnp.transpose(visual, (1, 0, 2, 3, 4)).reshape(NUM_FRAMES * B, C_IN, IMG, IMG)
    patches = _patchify(vis_tb).reshape(TOK_ALL, PATCH_DIM)
    pa_in = jnp.concatenate([jnp.transpose(proprio, (1, 0, 2)),
                             jnp.transpose(action, (1, 0, 2))], axis=-1)   # (T, B, 11)
    pa_tok = jnp.broadcast_to(pa_in[:, :, None, :],
                              (NUM_FRAMES, B, P, PA_IN)).reshape(TOK_ALL, PA_IN)
    x = jnp.concatenate([patches, pa_tok,
                         jnp.ones((TOK_ALL, 1), f32),
                         jnp.zeros((TOK_ALL, X_DIM - CONST_COL - 1), f32)], axis=1)  # (32, 256)

    # ---- single fused kernel: encode -> predict -> decode(both branches) -> all MSEs
    z_pred_f, dec_f, losses = _fused_forward(x, w_slab)

    # ---- back to (b, t, ...) layout for the returned tensors (loss path is independent)
    z_pred = jnp.transpose(z_pred_f[:, :EMB_DIM].reshape(NUM_HIST, B, P, EMB_DIM), (1, 0, 2, 3))
    dec_pred_f = dec_f[0:TOK_SRC, :PATCH_DIM]
    dec_recon_f = dec_f[TOK_SRC:TOK_SRC + TOK_ALL, :PATCH_DIM]
    visual_pred = jnp.transpose(
        _unpatchify(dec_pred_f.reshape(NUM_HIST * B, P, PATCH_DIM))
        .reshape(NUM_HIST, B, C_IN, IMG, IMG), (1, 0, 2, 3, 4))
    visual_reconstructed = jnp.transpose(
        _unpatchify(dec_recon_f.reshape(NUM_FRAMES * B, P, PATCH_DIM))
        .reshape(NUM_FRAMES, B, C_IN, IMG, IMG), (1, 0, 2, 3, 4))

    recon_loss_pred = losses[0]
    z_loss = losses[1]
    z_visual_loss = losses[2]
    z_proprio_loss = losses[3]
    recon_loss_reconstructed = losses[4]
    diff_pred = jnp.float32(0.0)           # TODO(synk): synthetic decoder has no VQ codebook; vq loss = 0.
    diff_reconstructed = jnp.float32(0.0)
    # TODO(synk): forward-only; Pallas kernel has no custom VJP, so jax.grad through this is unsupported.

    decoder_loss_pred = recon_loss_pred + DECODER_LATENT_LOSS_WEIGHT * diff_pred
    decoder_loss_reconstructed = recon_loss_reconstructed + DECODER_LATENT_LOSS_WEIGHT * diff_reconstructed
    # Matches reference: only z_loss and decoder_loss_reconstructed are added to the total.
    loss = z_loss + decoder_loss_reconstructed

    loss_components = {
        "decoder_recon_loss_pred": recon_loss_pred,
        "decoder_vq_loss_pred": diff_pred,
        "decoder_loss_pred": decoder_loss_pred,
        "z_loss": z_loss,
        "z_visual_loss": z_visual_loss,
        "z_proprio_loss": z_proprio_loss,
        "decoder_recon_loss_reconstructed": recon_loss_reconstructed,
        "decoder_vq_loss_reconstructed": diff_reconstructed,
        "decoder_loss_reconstructed": decoder_loss_reconstructed,
        "loss": loss,
    }
    return z_pred, visual_pred, visual_reconstructed, loss, loss_components


# ----------------------------------------------------------------------------- pure-JAX reference (for checking)
def _reference_forward(params, obs, act):
    hp = jax.lax.Precision.HIGHEST
    f32 = jnp.float32

    def lin(x, w, b):
        return jnp.dot(x, w, precision=hp) + b

    visual = obs["visual"].astype(f32)
    b, t = B, NUM_FRAMES
    patches = _patchify(visual.reshape(b * t, C_IN, IMG, IMG))
    vis_emb = lin(patches.reshape(b * t * P, PATCH_DIM),
                  params["enc_w"], params["enc_b"]).reshape(b, t, P, ENC_EMB)
    prop_emb = lin(obs["proprio"].reshape(b * t, PROPRIO_IN),
                   params["prop_w"], params["prop_b"]).reshape(b, t, PROPRIO_EMB)
    act_emb = lin(act.reshape(b * t, ACTION_IN),
                  params["act_w"], params["act_b"]).reshape(b, t, ACTION_EMB)
    prop_rep = jnp.tile(jnp.broadcast_to(prop_emb[:, :, None, :], (b, t, P, PROPRIO_EMB)),
                        (1, 1, 1, NUM_PROPRIO_REPEAT))
    act_rep = jnp.tile(jnp.broadcast_to(act_emb[:, :, None, :], (b, t, P, ACTION_EMB)),
                       (1, 1, 1, NUM_ACTION_REPEAT))
    z = jnp.concatenate([vis_emb, prop_rep, act_rep], axis=3)
    z_src, z_tgt = z[:, :NUM_HIST], z[:, NUM_PRED:]
    z_pred = lin(z_src.reshape(-1, EMB_DIM), params["pred_w"],
                 params["pred_b"]).reshape(b, NUM_HIST, P, EMB_DIM)

    def dec(zz):
        n = zz.shape[1]
        pt = lin(zz[..., :ENC_EMB].reshape(-1, ENC_EMB), params["dec_w"], params["dec_b"])
        return _unpatchify(pt.reshape(b * n, P, PATCH_DIM)).reshape(b, n, C_IN, IMG, IMG)

    visual_pred = dec(z_pred)
    visual_rec = dec(z)
    visual_tgt = visual[:, NUM_PRED:]
    mse = lambda x, y: jnp.mean((x - y) ** 2)
    recon_pred = mse(visual_pred, visual_tgt)
    recon_rec = mse(visual_rec, visual)
    z_vis_l = mse(z_pred[..., :ENC_EMB], z_tgt[..., :ENC_EMB])
    z_prop_l = mse(z_pred[..., ENC_EMB:ENC_EMB + PROPRIO_DIM],
                   z_tgt[..., ENC_EMB:ENC_EMB + PROPRIO_DIM])
    z_l = mse(z_pred[..., :EMB_DIM - ACTION_DIM], z_tgt[..., :EMB_DIM - ACTION_DIM])
    loss = z_l + recon_rec
    return z_pred, visual_pred, visual_rec, loss, dict(
        z_loss=z_l, z_visual_loss=z_vis_l, z_proprio_loss=z_prop_l,
        decoder_recon_loss_pred=recon_pred, decoder_recon_loss_reconstructed=recon_rec)


# ----------------------------------------------------------------------------- main
if __name__ == "__main__":
    key = jax.random.PRNGKey(0)
    k_params, k_vis, k_prop, k_act = jax.random.split(key, 4)

    params = init_params(k_params)
    # Parameter fusion is hoisted out of the per-step forward: built once, reused every call.
    w_slab = jax.block_until_ready(pack_params(params))

    obs = {
        "visual": jax.random.normal(k_vis, (B, NUM_FRAMES, C_IN, IMG, IMG), jnp.float32),
        "proprio": jax.random.normal(k_prop, (B, NUM_FRAMES, PROPRIO_IN), jnp.float32),
    }
    act = jax.random.normal(k_act, (B, NUM_FRAMES, ACTION_IN), jnp.float32)

    fwd = jax.jit(forward)
    z_pred, visual_pred, visual_reconstructed, loss, loss_components = fwd(w_slab, obs, act)
    jax.block_until_ready((z_pred, visual_pred, visual_reconstructed, loss))

    assert z_pred.shape == (B, NUM_HIST, P, EMB_DIM)
    assert visual_pred.shape == (B, NUM_HIST, C_IN, IMG, IMG)
    assert visual_reconstructed.shape == (B, NUM_FRAMES, C_IN, IMG, IMG)
    assert loss.shape == ()

    # Numerical check against a pure-JAX reference of the same synthetic model.
    rz, rvp, rvr, rloss, rlc = jax.jit(_reference_forward)(params, obs, act)
    np.testing.assert_allclose(np.asarray(z_pred), np.asarray(rz), rtol=1e-2, atol=1e-4)
    np.testing.assert_allclose(np.asarray(visual_pred), np.asarray(rvp), rtol=1e-2, atol=1e-4)
    np.testing.assert_allclose(np.asarray(visual_reconstructed), np.asarray(rvr), rtol=1e-2, atol=1e-4)
    np.testing.assert_allclose(float(loss), float(rloss), rtol=1e-2, atol=1e-4)
    for name in ("z_loss", "z_visual_loss", "z_proprio_loss",
                 "decoder_recon_loss_pred", "decoder_recon_loss_reconstructed"):
        np.testing.assert_allclose(float(loss_components[name]), float(rlc[name]),
                                   rtol=1e-2, atol=1e-4)

    print("KERNEL_OK")
</pallas_src>

<mosaic_0001>
module attributes {stable_mosaic.version = 11 : i64} {
  func.func @_fused_forward_kernel(%arg0: memref<32x256xf32, #tpu.memory_space<vmem>>, %arg1: memref<640x128xf32, #tpu.memory_space<vmem>>, %arg2: memref<24x128xf32, #tpu.memory_space<vmem>>, %arg3: memref<56x256xf32, #tpu.memory_space<vmem>>, %arg4: memref<5xf32, #tpu.memory_space<smem>>) attributes {dimension_semantics = [], scalar_prefetch = 0 : i64, scratch_operands = 0 : i64, tpu.core_type = #tpu.core_type<tc>} {
    %c0 = arith.constant 0 : index
    %c0_0 = arith.constant 0 : index
    %0 = vector.load %arg0[%c0, %c0_0] : memref<32x256xf32, #tpu.memory_space<vmem>>, vector<32x256xf32>
    %c0_1 = arith.constant 0 : index
    %c0_2 = arith.constant 0 : index
    %1 = vector.load %arg1[%c0_1, %c0_2] : memref<640x128xf32, #tpu.memory_space<vmem>>, vector<256x128xf32>
    %cst = arith.constant dense<0.000000e+00> : vector<32x128xf32>
    %2 = tpu.matmul %0, %1, %cst {dimension_numbers = #tpu.dot_dimension_numbers<[1], [0], [0], [1], [0, 0, 1, 1], [], []>} : vector<32x256xf32>, vector<256x128xf32>, vector<32x128xf32> -> vector<32x128xf32>
    %3 = vector.extract_strided_slice %2 {offsets = [0, 0], sizes = [24, 128], strides = [1, 1]} : vector<32x128xf32> to vector<24x128xf32>
    %c256 = arith.constant 256 : index
    %c0_3 = arith.constant 0 : index
    %4 = vector.load %arg1[%c256, %c0_3] : memref<640x128xf32, #tpu.memory_space<vmem>>, vector<128x128xf32>
    %cst_4 = arith.constant dense<0.000000e+00> : vector<24x128xf32>
    %5 = tpu.matmul %3, %4, %cst_4 {dimension_numbers = #tpu.dot_dimension_numbers<[1], [0], [0], [1], [0, 0, 1, 1], [], []>} : vector<24x128xf32>, vector<128x128xf32>, vector<24x128xf32> -> vector<24x128xf32>
    %c0_5 = arith.constant 0 : index
    %c0_6 = arith.constant 0 : index
    %6 = vector.load %arg2[%c0_5, %c0_6] : memref<24x128xf32, #tpu.memory_space<vmem>>, vector<24x128xf32>
    tpu.vector_store %arg2[%c0_5, %c0_6], %5 {strides = array<i32>} : memref<24x128xf32, #tpu.memory_space<vmem>>, vector<24x128xf32>,
    %c384 = arith.constant 384 : index
    %c0_7 = arith.constant 0 : index
    %7 = vector.load %arg1[%c384, %c0_7] : memref<640x128xf32, #tpu.memory_space<vmem>>, vector<128x128xf32>
    %c512 = arith.constant 512 : index
    %c0_8 = arith.constant 0 : index
    %8 = vector.load %arg1[%c512, %c0_8] : memref<640x128xf32, #tpu.memory_space<vmem>>, vector<128x128xf32>
    %cst_9 = arith.constant dense<0.000000e+00> : vector<24x128xf32>
    %9 = tpu.matmul %5, %7, %cst_9 {dimension_numbers = #tpu.dot_dimension_numbers<[1], [0], [0], [1], [0, 0, 1, 1], [], []>} : vector<24x128xf32>, vector<128x128xf32>, vector<24x128xf32> -> vector<24x128xf32>
    %cst_10 = arith.constant dense<0.000000e+00> : vector<24x128xf32>
    %10 = tpu.matmul %5, %8, %cst_10 {dimension_numbers = #tpu.dot_dimension_numbers<[1], [0], [0], [1], [0, 0, 1, 1], [], []>} : vector<24x128xf32>, vector<128x128xf32>, vector<24x128xf32> -> vector<24x128xf32>
    %cst_11 = arith.constant dense<0.000000e+00> : vector<32x128xf32>
    %11 = tpu.matmul %2, %7, %cst_11 {dimension_numbers = #tpu.dot_dimension_numbers<[1], [0], [0], [1], [0, 0, 1, 1], [], []>} : vector<32x128xf32>, vector<128x128xf32>, vector<32x128xf32> -> vector<32x128xf32>
    %cst_12 = arith.constant dense<0.000000e+00> : vector<32x128xf32>
    %12 = tpu.matmul %2, %8, %cst_12 {dimension_numbers = #tpu.dot_dimension_numbers<[1], [0], [0], [1], [0, 0, 1, 1], [], []>} : vector<32x128xf32>, vector<128x128xf32>, vector<32x128xf32> -> vector<32x128xf32>
    %c0_13 = arith.constant 0 : index
    %c0_14 = arith.constant 0 : index
    %13 = vector.load %arg3[%c0_13, %c0_14] : memref<56x256xf32, #tpu.memory_space<vmem>>, vector<24x128xf32>
    tpu.vector_store %arg3[%c0_13, %c0_14], %9 {strides = array<i32>} : memref<56x256xf32, #tpu.memory_space<vmem>>, vector<24x128xf32>,
    %c0_15 = arith.constant 0 : index
    %c128 = arith.constant 128 : index
    %14 = vector.load %arg3[%c0_15, %c128] : memref<56x256xf32, #tpu.memory_space<vmem>>, vector<24x128xf32>
    tpu.vector_store %arg3[%c0_15, %c128], %10 {strides = array<i32>} : memref<56x256xf32, #tpu.memory_space<vmem>>, vector<24x128xf32>,
    %c24 = arith.constant 24 : index
    %c0_16 = arith.constant 0 : index
    %15 = vector.load %arg3[%c24, %c0_16] : memref<56x256xf32, #tpu.memory_space<vmem>>, vector<32x128xf32>
    tpu.vector_store %arg3[%c24, %c0_16], %11 {strides = array<i32>} : memref<56x256xf32, #tpu.memory_space<vmem>>, vector<32x128xf32>,
    %c24_17 = arith.constant 24 : index
    %c128_18 = arith.constant 128 : index
    %16 = vector.load %arg3[%c24_17, %c128_18] : memref<56x256xf32, #tpu.memory_space<vmem>>, vector<32x128xf32>
    tpu.vector_store %arg3[%c24_17, %c128_18], %12 {strides = array<i32>} : memref<56x256xf32, #tpu.memory_space<vmem>>, vector<32x128xf32>,
    %17 = vector.extract_strided_slice %0 {offsets = [0, 0], sizes = [32, 128], strides = [1, 1]} : vector<32x256xf32> to vector<32x128xf32>
    %18 = vector.extract_strided_slice %0 {offsets = [0, 128], sizes = [32, 128], strides = [1, 1]} : vector<32x256xf32> to vector<32x128xf32>
    %19 = tpu.iota {dimensions = array<i32: 1>} : vector<32x128xi32>
    %c64_i32 = arith.constant 64 : i32
    %20 = vector.broadcast %c64_i32 : i32 to vector<32x128xi32>
    %21 = arith.cmpi slt, %19, %20 : vector<32x128xi32>
    %cst_19 = arith.constant 0.000000e+00 : f32
    %22 = vector.broadcast %cst_19 : f32 to vector<32x128xf32>
    %23 = arith.select %21, %18, %22 : vector<32x128xi1>, vector<32x128xf32>
    %24 = arith.subf %11, %17 : vector<32x128xf32>
    %25 = arith.mulf %24, %24 : vector<32x128xf32>
    %26 = arith.subf %12, %23 : vector<32x128xf32>
    %27 = arith.mulf %26, %26 : vector<32x128xf32>
    %28 = arith.addf %25, %27 : vector<32x128xf32>
    %29 = vector.extract_strided_slice %17 {offsets = [8, 0], sizes = [24, 128], strides = [1, 1]} : vector<32x128xf32> to vector<24x128xf32>
    %30 = arith.subf %9, %29 : vector<24x128xf32>
    %31 = arith.mulf %30, %30 : vector<24x128xf32>
    %32 = vector.extract_strided_slice %23 {offsets = [8, 0], sizes = [24, 128], strides = [1, 1]} : vector<32x128xf32> to vector<24x128xf32>
    %33 = arith.subf %10, %32 : vector<24x128xf32>
    %34 = arith.mulf %33, %33 : vector<24x128xf32>
    %35 = arith.addf %31, %34 : vector<24x128xf32>
    %36 = vector.extract_strided_slice %2 {offsets = [8, 0], sizes = [24, 128], strides = [1, 1]} : vector<32x128xf32> to vector<24x128xf32>
    %37 = arith.subf %5, %36 : vector<24x128xf32>
    %38 = arith.mulf %37, %37 : vector<24x128xf32>
    %cst_20 = arith.constant dense<0.000000e+00> : vector<128xf32>
    %39 = vector.multi_reduction <add>, %38, %cst_20 [0] : vector<24x128xf32> to vector<128xf32>
    %40 = vector.shape_cast %39 : vector<128xf32> to vector<1x128xf32>
    %41 = tpu.iota {dimensions = array<i32: 1>} : vector<1x128xi32>
    %c32_i32 = arith.constant 32 : i32
    %42 = vector.broadcast %c32_i32 : i32 to vector<1x128xi32>
    %43 = arith.cmpi slt, %41, %42 : vector<1x128xi32>
    %cst_21 = arith.constant 0.000000e+00 : f32
    %44 = vector.broadcast %cst_21 : f32 to vector<1x128xf32>
    %45 = arith.select %43, %40, %44 : vector<1x128xi1>, vector<1x128xf32>
    %46 = vector.shape_cast %45 : vector<1x128xf32> to vector<1x1x128xf32>
    %cst_22 = arith.constant dense<0.000000e+00> : vector<1xf32>
    %47 = vector.multi_reduction <add>, %46, %cst_22 [1, 2] : vector<1x1x128xf32> to vector<1xf32>
    %48 = vector.shape_cast %47 : vector<1xf32> to vector<1x1x1xf32>
    %49 = vector.extract %48[0, 0, 0] : f32 from vector<1x1x1xf32>
    %c32_i32_23 = arith.constant 32 : i32
    %50 = vector.broadcast %c32_i32_23 : i32 to vector<1x128xi32>
    %51 = arith.cmpi sge, %41, %50 : vector<1x128xi32>
    %c40_i32 = arith.constant 40 : i32
    %52 = vector.broadcast %c40_i32 : i32 to vector<1x128xi32>
    %53 = arith.cmpi slt, %41, %52 : vector<1x128xi32>
    %54 = arith.andi %51, %53 : vector<1x128xi1>
    %cst_24 = arith.constant 0.000000e+00 : f32
    %55 = vector.broadcast %cst_24 : f32 to vector<1x128xf32>
    %56 = arith.select %54, %40, %55 : vector<1x128xi1>, vector<1x128xf32>
    %57 = vector.shape_cast %56 : vector<1x128xf32> to vector<1x1x128xf32>
    %cst_25 = arith.constant dense<0.000000e+00> : vector<1xf32>
    %58 = vector.multi_reduction <add>, %57, %cst_25 [1, 2] : vector<1x1x128xf32> to vector<1xf32>
    %59 = vector.shape_cast %58 : vector<1xf32> to vector<1x1x1xf32>
    %60 = vector.extract %59[0, 0, 0] : f32 from vector<1x1x1xf32>
    %61 = vector.shape_cast %35 : vector<24x128xf32> to vector<1x24x128xf32>
    %cst_26 = arith.constant dense<0.000000e+00> : vector<1xf32>
    %62 = vector.multi_reduction <add>, %61, %cst_26 [1, 2] : vector<1x24x128xf32> to vector<1xf32>
    %63 = vector.shape_cast %62 : vector<1xf32> to vector<1x1x1xf32>
    %64 = vector.extract %63[0, 0, 0] : f32 from vector<1x1x1xf32>
    %cst_27 = arith.constant 4.608000e+03 : f32
    %65 = arith.divf %64, %cst_27 : f32
    %c0_28 = arith.constant 0 : index
    %66 = memref.load %arg4[%c0_28] : memref<5xf32, #tpu.memory_space<smem>>
    memref.store %65, %arg4[%c0_28] : memref<5xf32, #tpu.memory_space<smem>>
    %67 = arith.addf %49, %60 : f32
    %cst_29 = arith.constant 9.600000e+02 : f32
    %68 = arith.divf %67, %cst_29 : f32
    %c1 = arith.constant 1 : index
    %69 = memref.load %arg4[%c1] : memref<5xf32, #tpu.memory_space<smem>>
    memref.store %68, %arg4[%c1] : memref<5xf32, #tpu.memory_space<smem>>
    %cst_30 = arith.constant 7.680000e+02 : f32
    %70 = arith.divf %49, %cst_30 : f32
    %c2 = arith.constant 2 : index
    %71 = memref.load %arg4[%c2] : memref<5xf32, #tpu.memory_space<smem>>
    memref.store %70, %arg4[%c2] : memref<5xf32, #tpu.memory_space<smem>>
    %cst_31 = arith.constant 1.920000e+02 : f32
    %72 = arith.divf %60, %cst_31 : f32
    %c3 = arith.constant 3 : index
    %73 = memref.load %arg4[%c3] : memref<5xf32, #tpu.memory_space<smem>>
    memref.store %72, %arg4[%c3] : memref<5xf32, #tpu.memory_space<smem>>
    %74 = vector.shape_cast %28 : vector<32x128xf32> to vector<1x32x128xf32>
    %cst_32 = arith.constant dense<0.000000e+00> : vector<1xf32>
    %75 = vector.multi_reduction <add>, %74, %cst_32 [1, 2] : vector<1x32x128xf32> to vector<1xf32>
    %76 = vector.shape_cast %75 : vector<1xf32> to vector<1x1x1xf32>
    %77 = vector.extract %76[0, 0, 0] : f32 from vector<1x1x1xf32>
    %cst_33 = arith.constant 6.144000e+03 : f32
    %78 = arith.divf %77, %cst_33 : f32
    %c4 = arith.constant 4 : index
    %79 = memref.load %arg4[%c4] : memref<5xf32, #tpu.memory_space<smem>>
    memref.store %78, %arg4[%c4] : memref<5xf32, #tpu.memory_space<smem>>
    return
  }
}

</mosaic_0001>

<llo_original>
// kernel: forward.1
$region0: #{forward.1}
  #allocation0 [shape = 'u32[]', space=smem, size = 0x4, offset = 0x4, fixed_abs, tag = 'smem constant byte address 0x4 - core index']
  #allocation1 [shape = 'u32[144,128]{1,0:T(1,128)}', space=vmem, size = 0x12000, scoped, tag = 'internal scratch']
  %s0 = inlined_call_operand.vmem [shape: f32[32,256], index: 0, kind: input, shape index: {}]
  %s1 = inlined_call_operand.vmem [shape: f32[640,128], index: 1, kind: input, shape index: {}]
  %s2 = inlined_call_operand.vmem [shape: f32[24,128], index: 2, kind: output, shape index: {0}]
  %s3 = inlined_call_operand.vmem [shape: f32[56,256], index: 3, kind: output, shape index: {1}]
  %s4 = inlined_call_operand.vmem [shape: f32[5], index: 4, kind: output, shape index: {2}]
  %5 = xla_tuple %s2, %s3, %s4
  %s6 = sld [smem:[#allocation0]]
  $region34: #{forward.1} parent=0
    _
  %s8 = ssub.s32 1, %s6
  %s9 = scalar_select 0, %s8, %s6
  $region1: #{forward.1} parent=0
    #allocation2 [shape = 'u8[512]{0}', space=smem, size = 0x200, scoped, tag = 'output window, operand 2, single buffered']
    #allocation3 [shape = 's32[1]{0}', space=sflag, size = 0x4, scoped, tag = 'scoped memory for forward.1']
    %10 = vsyncpa [#allocation3], 0
    // Predicated region
    $region2: #{forward.1} parent=1 // pred_check
      _
    $region3: #{forward.1} parent=1 // pred_check_branch
      %12 = sbr.rel (0) target = $region5
    $region4: #{forward.1} parent=1 // pred_region
      _
    $region5: #{forward.1} parent=1 // pred_fallthru
      _
    // Predicated region
    $region6: #{forward.1} parent=1 // pred_check
      _
    $region7: #{forward.1} parent=1 // pred_check_branch
      %14 = sbr.rel (0) target = $region9
    $region8: #{forward.1} parent=1 // pred_region
      _
    $region9: #{forward.1} parent=1 // pred_fallthru
      _
    %v15 = vld [vmem:[%s0] sm:$0xff]
    %v16 = vld [vmem:[%s0 + $0x8] sm:$0xff]
    %v17 = vld [vmem:[%s0 + $0x10] sm:$0xff]
    %v18 = vld [vmem:[%s0 + $0x18] sm:$0xff]
    %v19 = vld [vmem:[%s0 + $0x20] sm:$0xff]
    %v20 = vld [vmem:[%s0 + $0x28] sm:$0xff]
    %v21 = vld [vmem:[%s0 + $0x30] sm:$0xff]
    %v22 = vld [vmem:[%s0 + $0x38] sm:$0xff]
    %v23 = vld [vmem:[%s1] sm:$0xff]
    %v24 = vld [vmem:[%s1 + $0x8] sm:$0xff]
    %v25 = vld [vmem:[%s1 + $0x10] sm:$0xff]
    %v26 = vld [vmem:[%s1 + $0x18] sm:$0xff]
    %v27 = vld [vmem:[%s1 + $0x20] sm:$0xff]
    %v28 = vld [vmem:[%s1 + $0x28] sm:$0xff]
    %v29 = vld [vmem:[%s1 + $0x30] sm:$0xff]
    %v30 = vld [vmem:[%s1 + $0x38] sm:$0xff]
    %v31 = vld [vmem:[%s1 + $0x40] sm:$0xff]
    %v32 = vld [vmem:[%s1 + $0x48] sm:$0xff]
    %v33 = vld [vmem:[%s1 + $0x50] sm:$0xff]
    %v34 = vld [vmem:[%s1 + $0x58] sm:$0xff]
    %v35 = vld [vmem:[%s1 + $0x60] sm:$0xff]
    %v36 = vld [vmem:[%s1 + $0x68] sm:$0xff]
    %v37 = vld [vmem:[%s1 + $0x70] sm:$0xff]
    %v38 = vld [vmem:[%s1 + $0x78] sm:$0xff]
    %v39 = vld [vmem:[%s1 + $0x80] sm:$0xff]
    %v40 = vld [vmem:[%s1 + $0x88] sm:$0xff]
    %v41 = vld [vmem:[%s1 + $0x90] sm:$0xff]
    %v42 = vld [vmem:[%s1 + $0x98] sm:$0xff]
    %v43 = vld [vmem:[%s1 + $0xa0] sm:$0xff]
    %v44 = vld [vmem:[%s1 + $0xa8] sm:$0xff]
    %v45 = vld [vmem:[%s1 + $0xb0] sm:$0xff]
    %v46 = vld [vmem:[%s1 + $0xb8] sm:$0xff]
    %v47 = vld [vmem:[%s1 + $0xc0] sm:$0xff]
    %v48 = vld [vmem:[%s1 + $0xc8] sm:$0xff]
    %v49 = vld [vmem:[%s1 + $0xd0] sm:$0xff]
    %v50 = vld [vmem:[%s1 + $0xd8] sm:$0xff]
    %v51 = vld [vmem:[%s1 + $0xe0] sm:$0xff]
    %v52 = vld [vmem:[%s1 + $0xe8] sm:$0xff]
    %v53 = vld [vmem:[%s1 + $0xf0] sm:$0xff]
    %v54 = vld [vmem:[%s1 + $0xf8] sm:$0xff]
    %55 = vmatprep.subr.mxu0 0.0
    %56 = vmatpush1.msra.mxu0 %v23
    %57 = vmatprep.subr.mxu0 0.0
    %58 = vmatpush1.msra.mxu0 %v24
    %59 = vmatprep.subr.mxu0 0.0
    %60 = vmatpush1.msra.mxu0 %v25
    %61 = vmatprep.subr.mxu0 0.0
    %62 = vmatpush1.msra.mxu0 %v26
    %63 = vmatprep.subr.mxu0 0.0
    %64 = vmatpush1.msra.mxu0 %v27
    %65 = vmatprep.subr.mxu0 0.0
    %66 = vmatpush1.msra.mxu0 %v28
    %67 = vmatprep.subr.mxu0 0.0
    %68 = vmatpush1.msra.mxu0 %v29
    %69 = vmatprep.subr.mxu0 0.0
    %70 = vmatpush1.msra.mxu0 %v30
    %71 = vmatprep.subr.mxu0 0.0
    %72 = vmatpush1.msra.mxu0 %v31
    %73 = vmatprep.subr.mxu0 0.0
    %74 = vmatpush1.msra.mxu0 %v32
    %75 = vmatprep.subr.mxu0 0.0
    %76 = vmatpush1.msra.mxu0 %v33
    %77 = vmatprep.subr.mxu0 0.0
    %78 = vmatpush1.msra.mxu0 %v34
    %79 = vmatprep.subr.mxu0 0.0
    %80 = vmatpush1.msra.mxu0 %v35
    %81 = vmatprep.subr.mxu0 0.0
    %82 = vmatpush1.msra.mxu0 %v36
    %83 = vmatprep.subr.mxu0 0.0
    %84 = vmatpush1.msra.mxu0 %v37
    %85 = vmatprep.subr.mxu0 0.0
    %86 = vmatpush1.msra.mxu0 %v38
    %87 = vmatprep.subr.mxu0 0.0
    %88 = vmatpush1.msra.mxu0 %v39
    %89 = vmatprep.subr.mxu0 0.0
    %90 = vmatpush1.msra.mxu0 %v40
    %91 = vmatprep.subr.mxu0 0.0
    %92 = vmatpush1.msra.mxu0 %v41
    %93 = vmatprep.subr.mxu0 0.0
    %94 = vmatpush1.msra.mxu0 %v42
    %95 = vmatprep.subr.mxu0 0.0
    %96 = vmatpush1.msra.mxu0 %v43
    %97 = vmatprep.subr.mxu0 0.0
    %98 = vmatpush1.msra.mxu0 %v44
    %99 = vmatprep.subr.mxu0 0.0
    %100 = vmatpush1.msra.mxu0 %v45
    %101 = vmatprep.subr.mxu0 0.0
    %102 = vmatpush1.msra.mxu0 %v46
    %103 = vmatprep.subr.mxu0 0.0
    %104 = vmatpush1.msra.mxu0 %v47
    %105 = vmatprep.subr.mxu0 0.0
    %106 = vmatpush1.msra.mxu0 %v48
    %107 = vmatprep.subr.mxu0 0.0
    %108 = vmatpush1.msra.mxu0 %v49
    %109 = vmatprep.subr.mxu0 0.0
    %110 = vmatpush1.msra.mxu0 %v50
    %111 = vmatprep.subr.mxu0 0.0
    %112 = vmatpush1.msra.mxu0 %v51
    %113 = vmatprep.subr.mxu0 0.0
    %114 = vmatpush1.msra.mxu0 %v52
    %115 = vmatprep.subr.mxu0 0.0
    %116 = vmatpush1.msra.mxu0 %v53
    %117 = vmatprep.subr.mxu0 0.0
    %118 = vmatpush1.msra.mxu0 %v54
    %119 = vmatprep.mubr.f32.mxu0 %v16
    %120 = vmatmul.mubr.f32.gmra.mrb[0].mxu0 %v15
    %v121 = vpop.f32.mrb[0].mxu0
    %v122 = vadd.f32 0.0, %v121
    %v123 = vpop.f32.mrb[0].mxu0
    %124 = vmatprep.mubr.f32.mxu0 %v18
    %125 = vmatmul.mubr.f32.gmra.mrb[0].mxu0 %v17
    %v126 = vpop.f32.mrb[0].mxu0
    %v127 = vadd.f32 0.0, %v126
    %v128 = vpop.f32.mrb[0].mxu0
    %129 = vmatprep.mubr.f32.mxu0 %v20
    %130 = vmatmul.mubr.f32.gmra.mrb[0].mxu0 %v19
    %v131 = vpop.f32.mrb[0].mxu0
    %v132 = vadd.f32 0.0, %v131
    %v133 = vpop.f32.mrb[0].mxu0
    %134 = vmatprep.mubr.f32.mxu0 %v22
    %135 = vmatmul.mubr.f32.gmra.mrb[0].mxu0 %v21
    %v136 = vpop.f32.mrb[0].mxu0
    %v137 = vadd.f32 0.0, %v136
    %v138 = vpop.f32.mrb[0].mxu0
    %139 = vdwg.mxu0
    %v140 = vld [vmem:[%s1 + $0x100] sm:$0xff]
    %v141 = vld [vmem:[%s1 + $0x108] sm:$0xff]
    %v142 = vld [vmem:[%s1 + $0x110] sm:$0xff]
    %v143 = vld [vmem:[%s1 + $0x118] sm:$0xff]
    %v144 = vld [vmem:[%s1 + $0x120] sm:$0xff]
    %v145 = vld [vmem:[%s1 + $0x128] sm:$0xff]
    %v146 = vld [vmem:[%s1 + $0x130] sm:$0xff]
    %v147 = vld [vmem:[%s1 + $0x138] sm:$0xff]
    %v148 = vld [vmem:[%s1 + $0x140] sm:$0xff]
    %v149 = vld [vmem:[%s1 + $0x148] sm:$0xff]
    %v150 = vld [vmem:[%s1 + $0x150] sm:$0xff]
    %v151 = vld [vmem:[%s1 + $0x158] sm:$0xff]
    %v152 = vld [vmem:[%s1 + $0x160] sm:$0xff]
    %v153 = vld [vmem:[%s1 + $0x168] sm:$0xff]
    %v154 = vld [vmem:[%s1 + $0x170] sm:$0xff]
    %v155 = vld [vmem:[%s1 + $0x178] sm:$0xff]
    %156 = vmatprep.subr.mxu0 0.0
    %157 = vmatpush1.msra.mxu0 %v140
    %158 = vmatprep.subr.mxu0 0.0
    %159 = vmatpush1.msra.mxu0 %v141
    %160 = vmatprep.subr.mxu0 0.0
    %161 = vmatpush1.msra.mxu0 %v142
    %162 = vmatprep.subr.mxu0 0.0
    %163 = vmatpush1.msra.mxu0 %v143
    %164 = vmatprep.subr.mxu0 0.0
    %165 = vmatpush1.msra.mxu0 %v144
    %166 = vmatprep.subr.mxu0 0.0
    %167 = vmatpush1.msra.mxu0 %v145
    %168 = vmatprep.subr.mxu0 0.0
    %169 = vmatpush1.msra.mxu0 %v146
    %170 = vmatprep.subr.mxu0 0.0
    %171 = vmatpush1.msra.mxu0 %v147
    %172 = vmatprep.subr.mxu0 0.0
    %173 = vmatpush1.msra.mxu0 %v148
    %174 = vmatprep.subr.mxu0 0.0
    %175 = vmatpush1.msra.mxu0 %v149
    %176 = vmatprep.subr.mxu0 0.0
    %177 = vmatpush1.msra.mxu0 %v150
    %178 = vmatprep.subr.mxu0 0.0
    %179 = vmatpush1.msra.mxu0 %v151
    %180 = vmatprep.subr.mxu0 0.0
    %181 = vmatpush1.msra.mxu0 %v152
    %182 = vmatprep.subr.mxu0 0.0
    %183 = vmatpush1.msra.mxu0 %v153
    %184 = vmatprep.subr.mxu0 0.0
    %185 = vmatpush1.msra.mxu0 %v154
    %186 = vmatprep.subr.mxu0 0.0
    %187 = vmatpush1.msra.mxu0 %v155
    %188 = vmatprep.subr.mxu0 0.0
    %189 = vmatpush1.msra.mxu0 0.0
    %190 = vmatprep.subr.mxu0 0.0
    %191 = vmatpush1.msra.mxu0 0.0
    %192 = vmatprep.subr.mxu0 0.0
    %193 = vmatpush1.msra.mxu0 0.0
    %194 = vmatprep.subr.mxu0 0.0
    %195 = vmatpush1.msra.mxu0 0.0
    %196 = vmatprep.subr.mxu0 0.0
    %197 = vmatpush1.msra.mxu0 0.0
    %198 = vmatprep.subr.mxu0 0.0
    %199 = vmatpush1.msra.mxu0 0.0
    %200 = vmatprep.subr.mxu0 0.0
    %201 = vmatpush1.msra.mxu0 0.0
    %202 = vmatprep.subr.mxu0 0.0
    %203 = vmatpush1.msra.mxu0 0.0
    %204 = vmatprep.subr.mxu0 0.0
    %205 = vmatpush1.msra.mxu0 0.0
    %206 = vmatprep.subr.mxu0 0.0
    %207 = vmatpush1.msra.mxu0 0.0
    %208 = vmatprep.subr.mxu0 0.0
    %209 = vmatpush1.msra.mxu0 0.0
    %210 = vmatprep.subr.mxu0 0.0
    %211 = vmatpush1.msra.mxu0 0.0
    %212 = vmatprep.subr.mxu0 0.0
    %213 = vmatpush1.msra.mxu0 0.0
    %214 = vmatprep.subr.mxu0 0.0
    %215 = vmatpush1.msra.mxu0 0.0
    %216 = vmatprep.subr.mxu0 0.0
    %217 = vmatpush1.msra.mxu0 0.0
    %218 = vmatprep.subr.mxu0 0.0
    %219 = vmatpush1.msra.mxu0 0.0
    %220 = vmatprep.mubr.f32.mxu0 0.0
    %221 = vmatmul.mubr.f32.gmra.mrb[0].mxu0 %v122
    %v222 = vpop.f32.mrb[0].mxu0
    %v223 = vadd.f32 0.0, %v222
    %v224 = vpop.f32.mrb[0].mxu0
    %225 = vmatprep.mubr.f32.mxu0 0.0
    %226 = vmatmul.mubr.f32.gmra.mrb[0].mxu0 %v127
    %v227 = vpop.f32.mrb[0].mxu0
    %v228 = vadd.f32 0.0, %v227
    %v229 = vpop.f32.mrb[0].mxu0
    %230 = vmatprep.mubr.f32.mxu0 0.0
    %231 = vmatmul.mubr.f32.gmra.mrb[0].mxu0 %v132
    %v232 = vpop.f32.mrb[0].mxu0
    %v233 = vadd.f32 0.0, %v232
    %v234 = vpop.f32.mrb[0].mxu0
    %235 = vdwg.mxu0
    %236 = vst [vmem:[%s2] sm:$0xff] %v223
    %237 = vst [vmem:[%s2 + $0x8] sm:$0xff] %v228
    %238 = vst [vmem:[%s2 + $0x10] sm:$0xff] %v233
    %v239 = vld [vmem:[%s1 + $0x180] sm:$0xff]
    %v240 = vld [vmem:[%s1 + $0x188] sm:$0xff]
    %v241 = vld [vmem:[%s1 + $0x190] sm:$0xff]
    %v242 = vld [vmem:[%s1 + $0x198] sm:$0xff]
    %v243 = vld [vmem:[%s1 + $0x1a0] sm:$0xff]
    %v244 = vld [vmem:[%s1 + $0x1a8] sm:$0xff]
    %v245 = vld [vmem:[%s1 + $0x1b0] sm:$0xff]
    %v246 = vld [vmem:[%s1 + $0x1b8] sm:$0xff]
    %v247 = vld [vmem:[%s1 + $0x1c0] sm:$0xff]
    %v248 = vld [vmem:[%s1 + $0x1c8] sm:$0xff]
    %v249 = vld [vmem:[%s1 + $0x1d0] sm:$0xff]
    %v250 = vld [vmem:[%s1 + $0x1d8] sm:$0xff]
    %v251 = vld [vmem:[%s1 + $0x1e0] sm:$0xff]
    %v252 = vld [vmem:[%s1 + $0x1e8] sm:$0xff]
    %v253 = vld [vmem:[%s1 + $0x1f0] sm:$0xff]
    %v254 = vld [vmem:[%s1 + $0x1f8] sm:$0xff]
    %v255 = vld [vmem:[%s1 + $0x200] sm:$0xff]
    %v256 = vld [vmem:[%s1 + $0x208] sm:$0xff]
    %v257 = vld [vmem:[%s1 + $0x210] sm:$0xff]
    %v258 = vld [vmem:[%s1 + $0x218] sm:$0xff]
    %v259 = vld [vmem:[%s1 + $0x220] sm:$0xff]
    %v260 = vld [vmem:[%s1 + $0x228] sm:$0xff]
    %v261 = vld [vmem:[%s1 + $0x230] sm:$0xff]
    %v262 = vld [vmem:[%s1 + $0x238] sm:$0xff]
    %v263 = vld [vmem:[%s1 + $0x240] sm:$0xff]
    %v264 = vld [vmem:[%s1 + $0x248] sm:$0xff]
    %v265 = vld [vmem:[%s1 + $0x250] sm:$0xff]
    %v266 = vld [vmem:[%s1 + $0x258] sm:$0xff]
    %v267 = vld [vmem:[%s1 + $0x260] sm:$0xff]
    %v268 = vld [vmem:[%s1 + $0x268] sm:$0xff]
    %v269 = vld [vmem:[%s1 + $0x270] sm:$0xff]
    %v270 = vld [vmem:[%s1 + $0x278] sm:$0xff]
    %271 = vmatprep.subr.mxu0 0.0
    %272 = vmatpush1.msra.mxu0 %v239
    %273 = vmatprep.subr.mxu0 0.0
    %274 = vmatpush1.msra.mxu0 %v240
    %275 = vmatprep.subr.mxu0 0.0
    %276 = vmatpush1.msra.mxu0 %v241
    %277 = vmatprep.subr.mxu0 0.0
    %278 = vmatpush1.msra.mxu0 %v242
    %279 = vmatprep.subr.mxu0 0.0
    %280 = vmatpush1.msra.mxu0 %v243
    %281 = vmatprep.subr.mxu0 0.0
    %282 = vmatpush1.msra.mxu0 %v244
    %283 = vmatprep.subr.mxu0 0.0
    %284 = vmatpush1.msra.mxu0 %v245
    %285 = vmatprep.subr.mxu0 0.0
    %286 = vmatpush1.msra.mxu0 %v246
    %287 = vmatprep.subr.mxu0 0.0
    %288 = vmatpush1.msra.mxu0 %v247
    %289 = vmatprep.subr.mxu0 0.0
    %290 = vmatpush1.msra.mxu0 %v248
    %291 = vmatprep.subr.mxu0 0.0
    %292 = vmatpush1.msra.mxu0 %v249
    %293 = vmatprep.subr.mxu0 0.0
    %294 = vmatpush1.msra.mxu0 %v250
    %295 = vmatprep.subr.mxu0 0.0
    %296 = vmatpush1.msra.mxu0 %v251
    %297 = vmatprep.subr.mxu0 0.0
    %298 = vmatpush1.msra.mxu0 %v252
    %299 = vmatprep.subr.mxu0 0.0
    %300 = vmatpush1.msra.mxu0 %v253
    %301 = vmatprep.subr.mxu0 0.0
    %302 = vmatpush1.msra.mxu0 %v254
    %303 = vmatprep.subr.mxu0 0.0
    %304 = vmatpush1.msra.mxu0 0.0
    %305 = vmatprep.subr.mxu0 0.0
    %306 = vmatpush1.msra.mxu0 0.0
    %307 = vmatprep.subr.mxu0 0.0
    %308 = vmatpush1.msra.mxu0 0.0
    %309 = vmatprep.subr.mxu0 0.0
    %310 = vmatpush1.msra.mxu0 0.0
    %311 = vmatprep.subr.mxu0 0.0
    %312 = vmatpush1.msra.mxu0 0.0
    %313 = vmatprep.subr.mxu0 0.0
    %314 = vmatpush1.msra.mxu0 0.0
    %315 = vmatprep.subr.mxu0 0.0
    %316 = vmatpush1.msra.mxu0 0.0
    %317 = vmatprep.subr.mxu0 0.0
    %318 = vmatpush1.msra.mxu0 0.0
    %319 = vmatprep.subr.mxu0 0.0
    %320 = vmatpush1.msra.mxu0 0.0
    %321 = vmatprep.subr.mxu0 0.0
    %322 = vmatpush1.msra.mxu0 0.0
    %323 = vmatprep.subr.mxu0 0.0
    %324 = vmatpush1.msra.mxu0 0.0
    %325 = vmatprep.subr.mxu0 0.0
    %326 = vmatpush1.msra.mxu0 0.0
    %327 = vmatprep.subr.mxu0 0.0
    %328 = vmatpush1.msra.mxu0 0.0
    %329 = vmatprep.subr.mxu0 0.0
    %330 = vmatpush1.msra.mxu0 0.0
    %331 = vmatprep.subr.mxu0 0.0
    %332 = vmatpush1.msra.mxu0 0.0
    %333 = vmatprep.subr.mxu0 0.0
    %334 = vmatpush1.msra.mxu0 0.0
    %335 = vmatprep.mubr.f32.mxu0 0.0
    %336 = vmatmul.mubr.f32.gmra.mrb[0].mxu0 %v223
    %v337 = vpop.f32.mrb[0].mxu0
    %v338 = vadd.f32 0.0, %v337
    %v339 = vpop.f32.mrb[0].mxu0
    %340 = vmatprep.mubr.f32.mxu0 0.0
    %341 = vmatmul.mubr.f32.gmra.mrb[0].mxu0 %v228
    %v342 = vpop.f32.mrb[0].mxu0
    %v343 = vadd.f32 0.0, %v342
    %v344 = vpop.f32.mrb[0].mxu0
    %345 = vmatprep.mubr.f32.mxu0 0.0
    %346 = vmatmul.mubr.f32.gmra.mrb[0].mxu0 %v233
    %v347 = vpop.f32.mrb[0].mxu0
    %v348 = vadd.f32 0.0, %v347
    %v349 = vpop.f32.mrb[0].mxu0
    %350 = vdwg.mxu0
    %351 = vmatprep.subr.mxu0 0.0
    %352 = vmatpush1.msra.mxu0 %v255
    %353 = vmatprep.subr.mxu0 0.0
    %354 = vmatpush1.msra.mxu0 %v256
    %355 = vmatprep.subr.mxu0 0.0
    %356 = vmatpush1.msra.mxu0 %v257
    %357 = vmatprep.subr.mxu0 0.0
    %358 = vmatpush1.msra.mxu0 %v258
    %359 = vmatprep.subr.mxu0 0.0
    %360 = vmatpush1.msra.mxu0 %v259
    %361 = vmatprep.subr.mxu0 0.0
    %362 = vmatpush1.msra.mxu0 %v260
    %363 = vmatprep.subr.mxu0 0.0
    %364 = vmatpush1.msra.mxu0 %v261
    %365 = vmatprep.subr.mxu0 0.0
    %366 = vmatpush1.msra.mxu0 %v262
    %367 = vmatprep.subr.mxu0 0.0
    %368 = vmatpush1.msra.mxu0 %v263
    %369 = vmatprep.subr.mxu0 0.0
    %370 = vmatpush1.msra.mxu0 %v264
    %371 = vmatprep.subr.mxu0 0.0
    %372 = vmatpush1.msra.mxu0 %v265
    %373 = vmatprep.subr.mxu0 0.0
    %374 = vmatpush1.msra.mxu0 %v266
    %375 = vmatprep.subr.mxu0 0.0
    %376 = vmatpush1.msra.mxu0 %v267
    %377 = vmatprep.subr.mxu0 0.0
    %378 = vmatpush1.msra.mxu0 %v268
    %379 = vmatprep.subr.mxu0 0.0
    %380 = vmatpush1.msra.mxu0 %v269
    %381 = vmatprep.subr.mxu0 0.0
    %382 = vmatpush1.msra.mxu0 %v270
    %383 = vmatprep.subr.mxu0 0.0
    %384 = vmatpush1.msra.mxu0 0.0
    %385 = vmatprep.subr.mxu0 0.0
    %386 = vmatpush1.msra.mxu0 0.0
    %387 = vmatprep.subr.mxu0 0.0
    %388 = vmatpush1.msra.mxu0 0.0
    %389 = vmatprep.subr.mxu0 0.0
    %390 = vmatpush1.msra.mxu0 0.0
    %391 = vmatprep.subr.mxu0 0.0
    %392 = vmatpush1.msra.mxu0 0.0
    %393 = vmatprep.subr.mxu0 0.0
    %394 = vmatpush1.msra.mxu0 0.0
    %395 = vmatprep.subr.mxu0 0.0
    %396 = vmatpush1.msra.mxu0 0.0
    %397 = vmatprep.subr.mxu0 0.0
    %398 = vmatpush1.msra.mxu0 0.0
    %399 = vmatprep.subr.mxu0 0.0
    %400 = vmatpush1.msra.mxu0 0.0
    %401 = vmatprep.subr.mxu0 0.0
    %402 = vmatpush1.msra.mxu0 0.0
    %403 = vmatprep.subr.mxu0 0.0
    %404 = vmatpush1.msra.mxu0 0.0
    %405 = vmatprep.subr.mxu0 0.0
    %406 = vmatpush1.msra.mxu0 0.0
    %407 = vmatprep.subr.mxu0 0.0
    %408 = vmatpush1.msra.mxu0 0.0
    %409 = vmatprep.subr.mxu0 0.0
    %410 = vmatpush1.msra.mxu0 0.0
    %411 = vmatprep.subr.mxu0 0.0
    %412 = vmatpush1.msra.mxu0 0.0
    %413 = vmatprep.subr.mxu0 0.0
    %414 = vmatpush1.msra.mxu0 0.0
    %415 = vmatprep.mubr.f32.mxu0 0.0
    %416 = vmatmul.mubr.f32.gmra.mrb[0].mxu0 %v223
    %v417 = vpop.f32.mrb[0].mxu0
    %v418 = vadd.f32 0.0, %v417
    %v419 = vpop.f32.mrb[0].mxu0
    %420 = vmatprep.mubr.f32.mxu0 0.0
    %421 = vmatmul.mubr.f32.gmra.mrb[0].mxu0 %v228
    %v422 = vpop.f32.mrb[0].mxu0
    %v423 = vadd.f32 0.0, %v422
    %v424 = vpop.f32.mrb[0].mxu0
    %425 = vmatprep.mubr.f32.mxu0 0.0
    %426 = vmatmul.mubr.f32.gmra.mrb[0].mxu0 %v233
    %v427 = vpop.f32.mrb[0].mxu0
    %v428 = vadd.f32 0.0, %v427
    %v429 = vpop.f32.mrb[0].mxu0
    %430 = vdwg.mxu0
    %431 = vmatprep.subr.mxu0 0.0
    %432 = vmatpush1.msra.mxu0 %v239
    %433 = vmatprep.subr.mxu0 0.0
    %434 = vmatpush1.msra.mxu0 %v240
    %435 = vmatprep.subr.mxu0 0.0
    %436 = vmatpush1.msra.mxu0 %v241
    %437 = vmatprep.subr.mxu0 0.0
    %438 = vmatpush1.msra.mxu0 %v242
    %439 = vmatprep.subr.mxu0 0.0
    %440 = vmatpush1.msra.mxu0 %v243
    %441 = vmatprep.subr.mxu0 0.0
    %442 = vmatpush1.msra.mxu0 %v244
    %443 = vmatprep.subr.mxu0 0.0
    %444 = vmatpush1.msra.mxu0 %v245
    %445 = vmatprep.subr.mxu0 0.0
    %446 = vmatpush1.msra.mxu0 %v246
    %447 = vmatprep.subr.mxu0 0.0
    %448 = vmatpush1.msra.mxu0 %v247
    %449 = vmatprep.subr.mxu0 0.0
    %450 = vmatpush1.msra.mxu0 %v248
    %451 = vmatprep.subr.mxu0 0.0
    %452 = vmatpush1.msra.mxu0 %v249
    %453 = vmatprep.subr.mxu0 0.0
    %454 = vmatpush1.msra.mxu0 %v250
    %455 = vmatprep.subr.mxu0 0.0
    %456 = vmatpush1.msra.mxu0 %v251
    %457 = vmatprep.subr.mxu0 0.0
    %458 = vmatpush1.msra.mxu0 %v252
    %459 = vmatprep.subr.mxu0 0.0
    %460 = vmatpush1.msra.mxu0 %v253
    %461 = vmatprep.subr.mxu0 0.0
    %462 = vmatpush1.msra.mxu0 %v254
    %463 = vmatprep.subr.mxu0 0.0
    %464 = vmatpush1.msra.mxu0 0.0
    %465 = vmatprep.subr.mxu0 0.0
    %466 = vmatpush1.msra.mxu0 0.0
    %467 = vmatprep.subr.mxu0 0.0
    %468 = vmatpush1.msra.mxu0 0.0
    %469 = vmatprep.subr.mxu0 0.0
    %470 = vmatpush1.msra.mxu0 0.0
    %471 = vmatprep.subr.mxu0 0.0
    %472 = vmatpush1.msra.mxu0 0.0
    %473 = vmatprep.subr.mxu0 0.0
    %474 = vmatpush1.msra.mxu0 0.0
    %475 = vmatprep.subr.mxu0 0.0
    %476 = vmatpush1.msra.mxu0 0.0
    %477 = vmatprep.subr.mxu0 0.0
    %478 = vmatpush1.msra.mxu0 0.0
    %479 = vmatprep.subr.mxu0 0.0
    %480 = vmatpush1.msra.mxu0 0.0
    %481 = vmatprep.subr.mxu0 0.0
    %482 = vmatpush1.msra.mxu0 0.0
    %483 = vmatprep.subr.mxu0 0.0
    %484 = vmatpush1.msra.mxu0 0.0
    %485 = vmatprep.subr.mxu0 0.0
    %486 = vmatpush1.msra.mxu0 0.0
    %487 = vmatprep.subr.mxu0 0.0
    %488 = vmatpush1.msra.mxu0 0.0
    %489 = vmatprep.subr.mxu0 0.0
    %490 = vmatpush1.msra.mxu0 0.0
    %491 = vmatprep.subr.mxu0 0.0
    %492 = vmatpush1.msra.mxu0 0.0
    %493 = vmatprep.subr.mxu0 0.0
    %494 = vmatpush1.msra.mxu0 0.0
    %495 = vmatprep.mubr.f32.mxu0 0.0
    %496 = vmatmul.mubr.f32.gmra.mrb[0].mxu0 %v122
    %v497 = vpop.f32.mrb[0].mxu0
    %v498 = vadd.f32 0.0, %v497
    %v499 = vpop.f32.mrb[0].mxu0
    %500 = vmatprep.mubr.f32.mxu0 0.0
    %501 = vmatmul.mubr.f32.gmra.mrb[0].mxu0 %v127
    %v502 = vpop.f32.mrb[0].mxu0
    %v503 = vadd.f32 0.0, %v502
    %v504 = vpop.f32.mrb[0].mxu0
    %505 = vmatprep.mubr.f32.mxu0 0.0
    %506 = vmatmul.mubr.f32.gmra.mrb[0].mxu0 %v132
    %v507 = vpop.f32.mrb[0].mxu0
    %v508 = vadd.f32 0.0, %v507
    %v509 = vpop.f32.mrb[0].mxu0
    %510 = vmatprep.mubr.f32.mxu0 0.0
    %511 = vmatmul.mubr.f32.gmra.mrb[0].mxu0 %v137
    %v512 = vpop.f32.mrb[0].mxu0
    %v513 = vadd.f32 0.0, %v512
    %v514 = vpop.f32.mrb[0].mxu0
    %515 = vdwg.mxu0
    %516 = vmatprep.subr.mxu0 0.0
    %517 = vmatpush1.msra.mxu0 %v255
    %518 = vmatprep.subr.mxu0 0.0
    %519 = vmatpush1.msra.mxu0 %v256
    %520 = vmatprep.subr.mxu0 0.0
    %521 = vmatpush1.msra.mxu0 %v257
    %522 = vmatprep.subr.mxu0 0.0
    %523 = vmatpush1.msra.mxu0 %v258
    %524 = vmatprep.subr.mxu0 0.0
    %525 = vmatpush1.msra.mxu0 %v259
    %526 = vmatprep.subr.mxu0 0.0
    %527 = vmatpush1.msra.mxu0 %v260
    %528 = vmatprep.subr.mxu0 0.0
    %529 = vmatpush1.msra.mxu0 %v261
    %530 = vmatprep.subr.mxu0 0.0
    %531 = vmatpush1.msra.mxu0 %v262
    %532 = vmatprep.subr.mxu0 0.0
    %533 = vmatpush1.msra.mxu0 %v263
    %534 = vmatprep.subr.mxu0 0.0
    %535 = vmatpush1.msra.mxu0 %v264
    %536 = vmatprep.subr.mxu0 0.0
    %537 = vmatpush1.msra.mxu0 %v265
    %538 = vmatprep.subr.mxu0 0.0
    %539 = vmatpush1.msra.mxu0 %v266
    %540 = vmatprep.subr.mxu0 0.0
    %541 = vmatpush1.msra.mxu0 %v267
    %542 = vmatprep.subr.mxu0 0.0
    %543 = vmatpush1.msra.mxu0 %v268
    %544 = vmatprep.subr.mxu0 0.0
    %545 = vmatpush1.msra.mxu0 %v269
    %546 = vmatprep.subr.mxu0 0.0
    %547 = vmatpush1.msra.mxu0 %v270
    %548 = vmatprep.subr.mxu0 0.0
    %549 = vmatpush1.msra.mxu0 0.0
    %550 = vmatprep.subr.mxu0 0.0
    %551 = vmatpush1.msra.mxu0 0.0
    %552 = vmatprep.subr.mxu0 0.0
    %553 = vmatpush1.msra.mxu0 0.0
    %554 = vmatprep.subr.mxu0 0.0
    %555 = vmatpush1.msra.mxu0 0.0
    %556 = vmatprep.subr.mxu0 0.0
    %557 = vmatpush1.msra.mxu0 0.0
    %558 = vmatprep.subr.mxu0 0.0
    %559 = vmatpush1.msra.mxu0 0.0
    %560 = vmatprep.subr.mxu0 0.0
    %561 = vmatpush1.msra.mxu0 0.0
    %562 = vmatprep.subr.mxu0 0.0
    %563 = vmatpush1.msra.mxu0 0.0
    %564 = vmatprep.subr.mxu0 0.0
    %565 = vmatpush1.msra.mxu0 0.0
    %566 = vmatprep.subr.mxu0 0.0
    %567 = vmatpush1.msra.mxu0 0.0
    %568 = vmatprep.subr.mxu0 0.0
    %569 = vmatpush1.msra.mxu0 0.0
    %570 = vmatprep.subr.mxu0 0.0
    %571 = vmatpush1.msra.mxu0 0.0
    %572 = vmatprep.subr.mxu0 0.0
    %573 = vmatpush1.msra.mxu0 0.0
    %574 = vmatprep.subr.mxu0 0.0
    %575 = vmatpush1.msra.mxu0 0.0
    %576 = vmatprep.subr.mxu0 0.0
    %577 = vmatpush1.msra.mxu0 0.0
    %578 = vmatprep.subr.mxu0 0.0
    %579 = vmatpush1.msra.mxu0 0.0
    %580 = vmatprep.mubr.f32.mxu0 0.0
    %581 = vmatmul.mubr.f32.gmra.mrb[0].mxu0 %v122
    %v582 = vpop.f32.mrb[0].mxu0
    %v583 = vadd.f32 0.0, %v582
    %v584 = vpop.f32.mrb[0].mxu0
    %585 = vmatprep.mubr.f32.mxu0 0.0
    %586 = vmatmul.mubr.f32.gmra.mrb[0].mxu0 %v127
    %v587 = vpop.f32.mrb[0].mxu0
    %v588 = vadd.f32 0.0, %v587
    %v589 = vpop.f32.mrb[0].mxu0
    %590 = vmatprep.mubr.f32.mxu0 0.0
    %591 = vmatmul.mubr.f32.gmra.mrb[0].mxu0 %v132
    %v592 = vpop.f32.mrb[0].mxu0
    %v593 = vadd.f32 0.0, %v592
    %v594 = vpop.f32.mrb[0].mxu0
    %595 = vmatprep.mubr.f32.mxu0 0.0
    %596 = vmatmul.mubr.f32.gmra.mrb[0].mxu0 %v137
    %v597 = vpop.f32.mrb[0].mxu0
    %v598 = vadd.f32 0.0, %v597
    %v599 = vpop.f32.mrb[0].mxu0
    %600 = vdwg.mxu0
    %601 = vst [vmem:[%s3] sm:$0xff] %v338
    %602 = vst [vmem:[%s3 + $0x10] sm:$0xff] %v343
    %603 = vst [vmem:[%s3 + $0x20] sm:$0xff] %v348
    %604 = vst [vmem:[%s3 + $0x8] sm:$0xff] %v418
    %605 = vst [vmem:[%s3 + $0x18] sm:$0xff] %v423
    %606 = vst [vmem:[%s3 + $0x28] sm:$0xff] %v428
    %607 = vst [vmem:[%s3 + $0x30] sm:$0xff] %v498
    %608 = vst [vmem:[%s3 + $0x40] sm:$0xff] %v503
    %609 = vst [vmem:[%s3 + $0x50] sm:$0xff] %v508
    %610 = vst [vmem:[%s3 + $0x60] sm:$0xff] %v513
    %611 = vst [vmem:[%s3 + $0x38] sm:$0xff] %v583
    %612 = vst [vmem:[%s3 + $0x48] sm:$0xff] %v588
    %613 = vst [vmem:[%s3 + $0x58] sm:$0xff] %v593
    %614 = vst [vmem:[%s3 + $0x68] sm:$0xff] %v598
    %v615 = vlaneseq
    %v616 = vand.u32 %v615, 127
    %vm617 = vcmp.lt.s32.totalorder %v616, 64
    %v618 = vsel %vm617, %v16, 0.0
    %v619 = vsel %vm617, %v18, 0.0
    %v620 = vsel %vm617, %v20, 0.0
    %v621 = vsel %vm617, %v22, 0.0
    %v622 = vsub.f32 %v498, %v15
    %v623 = vsub.f32 %v503, %v17
    %v624 = vsub.f32 %v508, %v19
    %v625 = vsub.f32 %v513, %v21
    %v626 = vmul.f32 %v622, %v622
    %v627 = vmul.f32 %v623, %v623
    %v628 = vmul.f32 %v624, %v624
    %v629 = vmul.f32 %v625, %v625
    %v630 = vsub.f32 %v583, %v618
    %v631 = vsub.f32 %v588, %v619
    %v632 = vsub.f32 %v593, %v620
    %v633 = vsub.f32 %v598, %v621
    %v634 = vmul.f32 %v630, %v630
    %v635 = vmul.f32 %v631, %v631
    %v636 = vmul.f32 %v632, %v632
    %v637 = vmul.f32 %v633, %v633
    %v638 = vadd.f32 %v626, %v634
    %v639 = vadd.f32 %v627, %v635
    %v640 = vadd.f32 %v628, %v636
    %v641 = vadd.f32 %v629, %v637
    %v642 = vsub.f32 %v338, %v17
    %v643 = vsub.f32 %v343, %v19
    %v644 = vsub.f32 %v348, %v21
    %v645 = vmul.f32 %v642, %v642
    %v646 = vmul.f32 %v643, %v643
    %v647 = vmul.f32 %v644, %v644
    %v648 = vsub.f32 %v418, %v619
    %v649 = vsub.f32 %v423, %v620
    %v650 = vsub.f32 %v428, %v621
    %v651 = vmul.f32 %v648, %v648
    %v652 = vmul.f32 %v649, %v649
    %v653 = vmul.f32 %v650, %v650
    %v654 = vadd.f32 %v645, %v651
    %v655 = vadd.f32 %v646, %v652
    %v656 = vadd.f32 %v647, %v653
    %v657 = vsub.f32 %v223, %v127
    %v658 = vsub.f32 %v228, %v132
    %v659 = vsub.f32 %v233, %v137
    %v660 = vmul.f32 %v657, %v657
    %v661 = vmul.f32 %v658, %v658
    %v662 = vmul.f32 %v659, %v659
    %v663 = vadd.f32 %v660, %v661
    %v664 = vadd.f32 %v663, %v662
    %v665 = vrot.slane %v664, 4
    %v666 = vadd.f32 %v664, %v665
    %v667 = vrot.slane %v666, 2
    %v668 = vadd.f32 %v666, %v667
    %v669 = vrot.slane %v668, 1
    %v670 = vadd.f32 %v668, %v669
    %vm671 = vcmp.lt.s32.totalorder %v616, 32
    %v672 = vsel %vm671, %v670, 0.0
    %vm673 = vcmask 1040384
    %v674 = vsel %vm673, %v672, 0.0
    %675 = vadd.xlane.f32.xlu0 %v674
    %v676 = vpop.xlane.xlu0 %675
    %v677 = vrot.slane %v676, 4
    %v678 = vadd.f32 %v676, %v677
    %v679 = vrot.slane %v678, 2
    %v680 = vadd.f32 %v678, %v679
    %v681 = vrot.slane %v680, 1
    %v682 = vadd.f32 %v680, %v681
    %s683 = vtos %v682
    %vm684 = vcmp.ge.s32.totalorder %v616, 32
    %vm685 = vcmp.lt.s32.totalorder %v616, 40
    %vm686 = vmand %vm684, %vm685
    %v687 = vsel %vm686, %v670, 0.0
    %v688 = vsel %vm673, %v687, 0.0
    %689 = vadd.xlane.f32.xlu0 %v688
    %v690 = vpop.xlane.xlu0 %689
    %v691 = vrot.slane %v690, 4
    %v692 = vadd.f32 %v690, %v691
    %v693 = vrot.slane %v692, 2
    %v694 = vadd.f32 %v692, %v693
    %v695 = vrot.slane %v694, 1
    %v696 = vadd.f32 %v694, %v695
    %s697 = vtos %v696
    %v698 = vadd.f32 %v654, %v655
    %v699 = vadd.f32 %v698, %v656
    %700 = vadd.xlane.f32.xlu0 %v699
    %v701 = vpop.xlane.xlu0 %700
    %v702 = vrot.slane %v701, 4
    %v703 = vadd.f32 %v701, %v702
    %v704 = vrot.slane %v703, 2
    %v705 = vadd.f32 %v703, %v704
    %v706 = vrot.slane %v705, 1
    %v707 = vadd.f32 %v705, %v706
    %s708 = vtos %v707
    %v709 = vrcp.pop 4608.0
    %s710 = vtos %v709
    %s711 = smul.f32 %s708, %s710
    %s712 = scalar_lea.smem [#allocation2], 0
    %713 = sst [smem:[%s712]] %s711
    %s714 = sadd.f32 %s683, %s697
    %v715 = vrcp.pop 960.0
    %s716 = vtos %v715
    %s717 = smul.f32 %s714, %s716
    %s718 = scalar_lea.smem [#allocation2], 1
    %719 = sst [smem:[%s718]] %s717
    %v720 = vrcp.pop 768.0
    %s721 = vtos %v720
    %s722 = smul.f32 %s683, %s721
    %s723 = scalar_lea.smem [#allocation2], 2
    %724 = sst [smem:[%s723]] %s722
    %v725 = vrcp.pop 192.0
    %s726 = vtos %v725
    %s727 = smul.f32 %s697, %s726
    %s728 = scalar_lea.smem [#allocation2], 3
    %729 = sst [smem:[%s728]] %s727
    %v730 = vadd.f32 %v638, %v639
    %v731 = vadd.f32 %v730, %v640
    %v732 = vadd.f32 %v731, %v641
    %733 = vadd.xlane.f32.xlu0 %v732
    %v734 = vpop.xlane.xlu0 %733
    %v735 = vrot.slane %v734, 4
    %v736 = vadd.f32 %v734, %v735
    %v737 = vrot.slane %v736, 2
    %v738 = vadd.f32 %v736, %v737
    %v739 = vrot.slane %v738, 1
    %v740 = vadd.f32 %v738, %v739
    %s741 = vtos %v740
    %v742 = vrcp.pop 6144.0
    %s743 = vtos %v742
    %s744 = smul.f32 %s741, %s743
    %s745 = scalar_lea.smem [#allocation2], 4
    %746 = sst [smem:[%s745]] %s744
    // Predicated region
    $region10: #{forward.1} parent=1 // pred_check
      _
    $region11: #{forward.1} parent=1 // pred_check_branch
      %748 = sbr.rel (0) target = $region13
    $region12: #{forward.1} parent=1 // pred_region
      _
    $region13: #{forward.1} parent=1 // pred_fallthru
      _
    // Predicated region
    $region14: #{forward.1} parent=1 // pred_check
      _
    $region15: #{forward.1} parent=1 // pred_check_branch
      %750 = sbr.rel (0) target = $region17
    $region16: #{forward.1} parent=1 // pred_region
      _
    $region17: #{forward.1} parent=1 // pred_fallthru
      _
    // Predicated region
    $region18: #{forward.1} parent=1 // pred_check
      _
    $region19: #{forward.1} parent=1 // pred_check_branch
      %752 = sbr.rel (0) target = $region21
    $region20: #{forward.1} parent=1 // pred_region
      %s754 = ssub.s32 16, 16
      %755 = vsyncadd [#allocation3], %s754
      %s757 = sshll.u32 %s4, 4
      %s758 = int_to_ptr.vmem [resolvable:$true] %s757
      %760 = dma.smem_to_vmem [#allocation2], 16, %s758, [#allocation3]
    $region21: #{forward.1} parent=1 // pred_fallthru
      _
    // Predicated region
    $region22: #{forward.1} parent=1 // pred_check
      _
    $region23: #{forward.1} parent=1 // pred_check_branch
      %762 = sbr.rel (0) target = $region25
    $region24: #{forward.1} parent=1 // pred_region
      _
    $region25: #{forward.1} parent=1 // pred_fallthru
      _
    // Predicated region
    $region26: #{forward.1} parent=1 // pred_check
      _
    $region27: #{forward.1} parent=1 // pred_check_branch
      %764 = sbr.rel (0) target = $region29
    $region28: #{forward.1} parent=1 // pred_region
      _
    $region29: #{forward.1} parent=1 // pred_fallthru
      _
    // Predicated region
    $region30: #{forward.1} parent=1 // pred_check
      _
    $region31: #{forward.1} parent=1 // pred_check_branch
      %766 = sbr.rel (0) target = $region33
    $region32: #{forward.1} parent=1 // pred_region
      %767 = dma.done [#allocation3], 16
    $region33: #{forward.1} parent=1 // pred_fallthru
      _
    %768 = sfence
    %769 = vsyncpa [#allocation3], 1

</llo_original>
